<compile_context>
chip_gen: v7x
topology: tpu7x:2x2x1
jax: 0.10.0
libtpu: 0.0.40
codegen_flags: <defaults>
</compile_context>

<pallas_src>
import functools

import jax
import jax.numpy as jnp
from jax.experimental import pallas as pl
from jax.experimental.pallas import tpu as pltpu


def _leaky_relu(x, negative_slope=0.01):
    return jnp.where(x > 0, x, negative_slope * x)


def _round_up(x, m):
    return ((x + m - 1) // m) * m


def implicit_net_kernel(*refs, num_layers, use_tanh, clamp_dist, compute_dtype):
    """Fused N-layer MLP, feature-major.

    refs layout: (x_ref, w0_ref, b0_ref, ..., w{L-1}_ref, b{L-1}_ref, o_ref)
      x_ref:  (d_in, tile_n)    points on the lane axis
      wX_ref: (out_dim, in_dim) PyTorch nn.Linear layout
      bX_ref: (out_dim, 1)      broadcasts along lanes
      o_ref:  (1, tile_n)       lane-dense output block
    Semantics: LeakyReLU(0.01) after every layer except the last, optional
    tanh, then multiply by clamp_dist (exactly like the PyTorch forward).
    """
    x_ref = refs[0]
    o_ref = refs[-1]
    layer_refs = refs[1:-1]

    h = x_ref[...]  # already compute_dtype from the wrapper
    for layer in range(num_layers):
        w_ref = layer_refs[2 * layer]
        b_ref = layer_refs[2 * layer + 1]
        # (out, in) @ (in, tile_n) -> (out, tile_n), accumulate in f32 on MXU.
        h = jnp.dot(w_ref[...], h.astype(compute_dtype),
                    preferred_element_type=jnp.float32) + b_ref[...]
        if layer < num_layers - 1:
            h = _leaky_relu(h)

    if use_tanh:
        h = jnp.tanh(h)
    o_ref[...] = (h * clamp_dist).astype(o_ref.dtype)


def implicit_net_forward(x, params, *, use_tanh=True, clamp_dist=-1.0,
                         tile_n=2048, compute_dtype=jnp.float32):
    """ImplicitNet forward pass with a point-tiled, feature-major Pallas kernel.

    x:      (N, d_in) float32 points (latent || xyz)
    params: [(w0, b0), ..., (wL-1, bL-1)] with wX shaped (out_dim, in_dim) and
            bX shaped (out_dim,)  (PyTorch nn.Linear convention).  Final
            out_dim must be 1.
    compute_dtype: matmul operand dtype (jnp.float32 or jnp.bfloat16).  Bias
            add, LeakyReLU and tanh always run in f32.
    """
    num_layers = len(params)
    n, d_in = x.shape
    d_out = params[-1][0].shape[0]
    assert d_out == 1, "ImplicitNet emits a single SDF value per point"

    # Effective tile: multiple of 128 (lane width), no bigger than padded N.
    tile = min(int(tile_n), _round_up(n, 128))
    tile = max(128, _round_up(tile, 128))
    n_pad = _round_up(n, tile)

    # One-time layout plumbing in the wrapper (outside the kernel):
    # pad N, transpose to feature-major (d_in, n_pad), cast matmul operands.
    x_pad = jnp.pad(x, ((0, n_pad - n), (0, 0)))
    x_t = x_pad.T.astype(compute_dtype)                      # (d_in, n_pad)

    flat_inputs = [x_t]
    in_specs = [pl.BlockSpec((d_in, tile), lambda i: (0, i))]  # lane-dense x

    # Weights/biases are tiny; pass the full tensors to every grid step.
    def full_spec(shape):
        return pl.BlockSpec(shape, lambda i, _s=shape: tuple(0 for _ in _s))

    for (w, b) in params:
        out_dim, in_dim = w.shape
        wc = w.astype(compute_dtype)
        bc = b.reshape(out_dim, 1).astype(jnp.float32)
        flat_inputs += [wc, bc]
        in_specs += [full_spec((out_dim, in_dim)), full_spec((out_dim, 1))]

    kernel = functools.partial(
        implicit_net_kernel,
        num_layers=num_layers,
        use_tanh=use_tanh,
        clamp_dist=float(clamp_dist),
        compute_dtype=compute_dtype,
    )

    out = pl.pallas_call(
        kernel,
        out_shape=jax.ShapeDtypeStruct((d_out, n_pad), jnp.float32),
        grid_spec=pltpu.PrefetchScalarGridSpec(
            num_scalar_prefetch=0,
            grid=(n_pad // tile,),
            in_specs=in_specs,
            out_specs=pl.BlockSpec((d_out, tile), lambda i: (0, i)),
        ),
        compiler_params=pltpu.CompilerParams(
            dimension_semantics=("parallel",),
        ),
    )(*flat_inputs)

    # (1, n_pad) lane-dense output -> (N, 1), dropping padded points.
    return out[0, :n].reshape(n, 1)


def init_params(key, dims):
    """Deterministic PyTorch-style nn.Linear init: U(-1/sqrt(fan_in), +1/sqrt(fan_in)).

    Returns weights in PyTorch layout: W (out_dim, in_dim), b (out_dim,).
    """
    params = []
    for i in range(len(dims) - 1):
        fan_in, fan_out = dims[i], dims[i + 1]
        key, kw, kb = jax.random.split(key, 3)
        bound = 1.0 / jnp.sqrt(fan_in)
        w = jax.random.uniform(kw, (fan_out, fan_in), jnp.float32, -bound, bound)
        b = jax.random.uniform(kb, (fan_out,), jnp.float32, -bound, bound)
        params.append((w, b))
    return params


def reference_forward(x, params, use_tanh=True, clamp_dist=-1.0):
    h = x
    for layer, (w, b) in enumerate(params):
        h = h @ w.T + b
        if layer < len(params) - 1:
            h = _leaky_relu(h)
    if use_tanh:
        h = jnp.tanh(h)
    return h * clamp_dist


if __name__ == "__main__":
    # Module config: latent_dim=13 -> input dim 16, hidden_dims=[32, 32], out=1.
    latent_dim = 13
    hidden_dims = [32, 32]
    use_tanh = True
    clamp_dist = -1.0  # PyTorch default; forward always multiplies by it.

    dims = [latent_dim + 3] + hidden_dims + [1]

    key = jax.random.PRNGKey(0)
    key, kx = jax.random.split(key)
    # Non-multiple-of-tile N exercises the padding path; tile_n=512 keeps a
    # multi-step parallel grid (shards across v7x's two TensorCores).
    n_points = 1000
    x = jax.random.normal(kx, (n_points, dims[0]), jnp.float32)

    params = init_params(key, dims)

    out = implicit_net_forward(
        x, params, use_tanh=use_tanh, clamp_dist=clamp_dist,
        tile_n=512, compute_dtype=jnp.float32,
    )
    out = jax.block_until_ready(out)

    ref = reference_forward(x, params, use_tanh=use_tanh, clamp_dist=clamp_dist)
    assert out.shape == (n_points, 1)
    assert jnp.allclose(out, ref, atol=1e-5, rtol=1e-5), "mismatch vs reference"

    # TODO(synk): flip compute_dtype to jnp.bfloat16 (halves x HBM traffic) once
    # SDF accuracy tolerance is validated for the target application.

    print("KERNEL_OK")
</pallas_src>

<mosaic_0001>
module attributes {stable_mosaic.version = 11 : i64} {
  func.func @implicit_net_kernel(%arg0: i32, %arg1: memref<16x512xf32, #tpu.memory_space<vmem>>, %arg2: memref<32x16xf32, #tpu.memory_space<vmem>>, %arg3: memref<32x1xf32, #tpu.memory_space<vmem>>, %arg4: memref<32x32xf32, #tpu.memory_space<vmem>>, %arg5: memref<32x1xf32, #tpu.memory_space<vmem>>, %arg6: memref<1x32xf32, #tpu.memory_space<vmem>>, %arg7: memref<1x1xf32, #tpu.memory_space<vmem>>, %arg8: memref<1x512xf32, #tpu.memory_space<vmem>>) attributes {dimension_semantics = [#tpu.dimension_semantics<parallel>], iteration_bounds = array<i64: 2>, scalar_prefetch = 0 : i64, scratch_operands = 0 : i64, tpu.core_type = #tpu.core_type<tc>, window_params = [{transform_indices = @transform_0, window_bounds = array<i64: 16, 512>}, {pipeline_mode = #tpu.pipeline_mode<synchronous>, transform_indices = @transform_1, window_bounds = array<i64: 32, 16>}, {pipeline_mode = #tpu.pipeline_mode<synchronous>, transform_indices = @transform_2, window_bounds = array<i64: 32, 1>}, {pipeline_mode = #tpu.pipeline_mode<synchronous>, transform_indices = @transform_3, window_bounds = array<i64: 32, 32>}, {pipeline_mode = #tpu.pipeline_mode<synchronous>, transform_indices = @transform_4, window_bounds = array<i64: 32, 1>}, {pipeline_mode = #tpu.pipeline_mode<synchronous>, transform_indices = @transform_5, window_bounds = array<i64: 1, 32>}, {pipeline_mode = #tpu.pipeline_mode<synchronous>, transform_indices = @transform_6, window_bounds = array<i64: 1, 1>}, {transform_indices = @transform_7, window_bounds = array<i64: 1, 512>}]} {
    %c0 = arith.constant 0 : index
    %c0_0 = arith.constant 0 : index
    %0 = vector.load %arg1[%c0, %c0_0] : memref<16x512xf32, #tpu.memory_space<vmem>>, vector<16x512xf32>
    %c0_1 = arith.constant 0 : index
    %c0_2 = arith.constant 0 : index
    %1 = vector.load %arg2[%c0_1, %c0_2] : memref<32x16xf32, #tpu.memory_space<vmem>>, vector<32x16xf32>
    %cst = arith.constant dense<0.000000e+00> : vector<32x512xf32>
    %2 = tpu.matmul %1, %0, %cst {dimension_numbers = #tpu.dot_dimension_numbers<[1], [0], [0], [1], [0, 0, 1, 1], [], []>} : vector<32x16xf32>, vector<16x512xf32>, vector<32x512xf32> -> vector<32x512xf32>
    %c0_3 = arith.constant 0 : index
    %c0_4 = arith.constant 0 : index
    %3 = vector.load %arg3[%c0_3, %c0_4] : memref<32x1xf32, #tpu.memory_space<vmem>>, vector<32x1xf32>
    %4 = vector.broadcast %3 : vector<32x1xf32> to vector<32x512xf32>
    %5 = arith.addf %2, %4 : vector<32x512xf32>
    %cst_5 = arith.constant 0.000000e+00 : f32
    %6 = vector.broadcast %cst_5 : f32 to vector<32x512xf32>
    %7 = arith.cmpf ogt, %5, %6 : vector<32x512xf32>
    %cst_6 = arith.constant 0.00999999977 : f32
    %8 = vector.broadcast %cst_6 : f32 to vector<32x512xf32>
    %9 = arith.mulf %8, %5 : vector<32x512xf32>
    %10 = arith.select %7, %5, %9 : vector<32x512xi1>, vector<32x512xf32>
    %c0_7 = arith.constant 0 : index
    %c0_8 = arith.constant 0 : index
    %11 = vector.load %arg4[%c0_7, %c0_8] : memref<32x32xf32, #tpu.memory_space<vmem>>, vector<32x32xf32>
    %cst_9 = arith.constant dense<0.000000e+00> : vector<32x512xf32>
    %12 = tpu.matmul %11, %10, %cst_9 {dimension_numbers = #tpu.dot_dimension_numbers<[1], [0], [0], [1], [0, 0, 1, 1], [], []>} : vector<32x32xf32>, vector<32x512xf32>, vector<32x512xf32> -> vector<32x512xf32>
    %c0_10 = arith.constant 0 : index
    %c0_11 = arith.constant 0 : index
    %13 = vector.load %arg5[%c0_10, %c0_11] : memref<32x1xf32, #tpu.memory_space<vmem>>, vector<32x1xf32>
    %14 = vector.broadcast %13 : vector<32x1xf32> to vector<32x512xf32>
    %15 = arith.addf %12, %14 : vector<32x512xf32>
    %cst_12 = arith.constant 0.000000e+00 : f32
    %16 = vector.broadcast %cst_12 : f32 to vector<32x512xf32>
    %17 = arith.cmpf ogt, %15, %16 : vector<32x512xf32>
    %cst_13 = arith.constant 0.00999999977 : f32
    %18 = vector.broadcast %cst_13 : f32 to vector<32x512xf32>
    %19 = arith.mulf %18, %15 : vector<32x512xf32>
    %20 = arith.select %17, %15, %19 : vector<32x512xi1>, vector<32x512xf32>
    %c0_14 = arith.constant 0 : index
    %c0_15 = arith.constant 0 : index
    %21 = vector.load %arg6[%c0_14, %c0_15] : memref<1x32xf32, #tpu.memory_space<vmem>>, vector<1x32xf32>
    %cst_16 = arith.constant dense<0.000000e+00> : vector<1x512xf32>
    %22 = tpu.matmul %21, %20, %cst_16 {dimension_numbers = #tpu.dot_dimension_numbers<[1], [0], [0], [1], [0, 0, 1, 1], [], []>} : vector<1x32xf32>, vector<32x512xf32>, vector<1x512xf32> -> vector<1x512xf32>
    %c0_17 = arith.constant 0 : index
    %c0_18 = arith.constant 0 : index
    %23 = vector.load %arg7[%c0_17, %c0_18] : memref<1x1xf32, #tpu.memory_space<vmem>>, vector<1x1xf32>
    %24 = vector.broadcast %23 : vector<1x1xf32> to vector<1x512xf32>
    %25 = arith.addf %22, %24 : vector<1x512xf32>
    %26 = math.tanh %25 : vector<1x512xf32>
    %cst_19 = arith.constant -1.000000e+00 : f32
    %27 = vector.broadcast %cst_19 : f32 to vector<1x512xf32>
    %28 = arith.mulf %26, %27 : vector<1x512xf32>
    %c0_20 = arith.constant 0 : index
    %c0_21 = arith.constant 0 : index
    %29 = vector.load %arg8[%c0_20, %c0_21] : memref<1x512xf32, #tpu.memory_space<vmem>>, vector<1x512xf32>
    tpu.vector_store %arg8[%c0_20, %c0_21], %28 {strides = array<i32>} : memref<1x512xf32, #tpu.memory_space<vmem>>, vector<1x512xf32>,
    return
  }
  func.func @transform_0(%arg0: i32) -> (i32, i32) {
    %c0_i32 = arith.constant 0 : i32
    %c0_i32_0 = arith.constant 0 : i32
    return %c0_i32, %arg0 : i32, i32
  }
  func.func @transform_1(%arg0: i32) -> (i32, i32) {
    %c0_i32 = arith.constant 0 : i32
    %c0_i32_0 = arith.constant 0 : i32
    %c0_i32_1 = arith.constant 0 : i32
    return %c0_i32, %c0_i32_0 : i32, i32
  }
  func.func @transform_2(%arg0: i32) -> (i32, i32) {
    %c0_i32 = arith.constant 0 : i32
    %c0_i32_0 = arith.constant 0 : i32
    %c0_i32_1 = arith.constant 0 : i32
    return %c0_i32, %c0_i32_0 : i32, i32
  }
  func.func @transform_3(%arg0: i32) -> (i32, i32) {
    %c0_i32 = arith.constant 0 : i32
    %c0_i32_0 = arith.constant 0 : i32
    %c0_i32_1 = arith.constant 0 : i32
    return %c0_i32, %c0_i32_0 : i32, i32
  }
  func.func @transform_4(%arg0: i32) -> (i32, i32) {
    %c0_i32 = arith.constant 0 : i32
    %c0_i32_0 = arith.constant 0 : i32
    %c0_i32_1 = arith.constant 0 : i32
    return %c0_i32, %c0_i32_0 : i32, i32
  }
  func.func @transform_5(%arg0: i32) -> (i32, i32) {
    %c0_i32 = arith.constant 0 : i32
    %c0_i32_0 = arith.constant 0 : i32
    %c0_i32_1 = arith.constant 0 : i32
    return %c0_i32, %c0_i32_0 : i32, i32
  }
  func.func @transform_6(%arg0: i32) -> (i32, i32) {
    %c0_i32 = arith.constant 0 : i32
    %c0_i32_0 = arith.constant 0 : i32
    %c0_i32_1 = arith.constant 0 : i32
    return %c0_i32, %c0_i32_0 : i32, i32
  }
  func.func @transform_7(%arg0: i32) -> (i32, i32) {
    %c0_i32 = arith.constant 0 : i32
    %c0_i32_0 = arith.constant 0 : i32
    return %c0_i32, %arg0 : i32, i32
  }
}

</mosaic_0001>

<llo_original>
// kernel: tpu_custom_call.1
$region0: #{tpu_custom_call.1}
  #allocation0 [shape = 'u32[]', space=smem, size = 0x4, offset = 0x4, fixed_abs, tag = 'smem constant byte address 0x4 - core index']
  #allocation1 [shape = 'u32[144,128]{1,0:T(1,128)}', space=vmem, size = 0x12000, scoped, tag = 'internal scratch']
  #allocation2 [shape = 'f32[1,1]{1,0:T(1,128)S(1)}', space=vmem, size = 0x200, scoped, tag = 'scoped memory for tpu_custom_call.1']
  %s0 = inlined_call_operand.hbm [shape: f32[16,1024], index: 0, kind: input, shape index: {}]
  %s1 = inlined_call_operand.vmem [shape: f32[32,16], index: 1, kind: input, shape index: {}]
  %s2 = inlined_call_operand.vmem [shape: f32[32,1], index: 2, kind: input, shape index: {}]
  %s3 = inlined_call_operand.vmem [shape: f32[32,32], index: 3, kind: input, shape index: {}]
  %s4 = inlined_call_operand.vmem [shape: f32[32,1], index: 4, kind: input, shape index: {}]
  %s5 = inlined_call_operand.vmem [shape: f32[1,32], index: 5, kind: input, shape index: {}]
  %s6 = inlined_call_operand.<no memory space> [shape: f32[1,1], index: 6, kind: input, shape index: {}]
  %s7 = inlined_call_operand.hbm [shape: f32[1,1024], index: 7, kind: output, shape index: {}]
  %s8 = sld [smem:[#allocation0]]
  $region65: #{tpu_custom_call.1} parent=0
    _
  %s10 = ssub.s32 1, %s8
  %s11 = scalar_select 0, %s10, %s8
  %v12 = vstv %s6
  %13 = vst [vmem:[#allocation2] sm:$0x1] %v12
  $region1: #{tpu_custom_call.1} parent=0
    #allocation3 [shape = 'u8[65536]{0}', space=vmem, size = 0x10000, scoped, tag = 'input window, operand 0']
    #allocation4 [shape = 's32[2]{0}', space=sflag, size = 0x8, scoped, tag = 'scoped memory for tpu_custom_call.1']
    #allocation5 [shape = 's32[2]{0}', space=sflag, size = 0x8, scoped, tag = 'scoped memory for tpu_custom_call.1']
    #allocation6 [shape = 'u8[4096]{0}', space=vmem, size = 0x1000, scoped, tag = 'output window, operand 0']
    %14 = vsyncpa [#allocation4], 0
    %s15 = scalar_lea.sflag [#allocation4], 1
    %16 = vsyncpa %s15, 0
    %17 = vsyncpa [#allocation5], 0
    %s18 = scalar_lea.sflag [#allocation5], 1
    %19 = vsyncpa %s18, 0
    loop: start=0, step=1, limit=4
    $region2: #{tpu_custom_call.1} parent=1 // loop_pre_header
      _
    $region3: #{tpu_custom_call.1} parent=1 // loop_header
      %s21 = sphi 0, %s25
      %p22 = scmp.ge.s32.totalorder %s21, 4
      %s31 = sphi 0, %s33
      %s34 = sphi 0, %s31
      %s35 = sphi 0, %s34
      %s51 = sphi 0, %s35
      %s55 = sphi 0, %s55
      %s57 = sphi 0, %s55
      %s58 = sphi 0, %s57
      %s72 = sphi 0, %s58
      %s76 = sphi 0, %s76
      %s78 = sphi 0, %s76
      %s79 = sphi 0, %s78
      %s93 = sphi 0, %s79
      %s97 = sphi 0, %s97
      %s99 = sphi 0, %s97
      %s100 = sphi 0, %s99
      %s114 = sphi 0, %s100
      %s118 = sphi 0, %s118
      %s120 = sphi 0, %s118
      %s121 = sphi 0, %s120
      %s135 = sphi 0, %s121
      %s139 = sphi 0, %s139
      %s141 = sphi 0, %s139
      %s142 = sphi 0, %s141
      %s156 = sphi 0, %s142
      %s160 = sphi 0, %s160
      %s162 = sphi 0, %s160
      %s163 = sphi 0, %s162
      %s177 = sphi 0, %s163
      %s183 = sphi 0, %s185
      %s186 = sphi 0, %s183
      %s187 = sphi 0, %s186
      %s203 = sphi 0, %s187
    $region4: #{tpu_custom_call.1} parent=1 // loop_header_branch
      %24 = sbr.rel (%p22) target = $region8
    $region5: #{tpu_custom_call.1} parent=1 // loop_body
      %s26 = ssub.s32 %s21, 1
      %s27 = ssub.s32 %s21, 2
      %s28 = sadd.s32 %s21, 1
      %s29 = ssub.s32 %s21, %s28
      %p30 = scmp.eq.s32.totalorder %s29, 0
      %s32 = sadd.s32 %s31, 1
      %s33 = scalar_select %p30, %s31, %s32
      %p36 = pneg %p30
      %p37 = scmp.eq.s32.totalorder %s21, 1
      %p38 = por %p36, %p37
      %p39 = scmp.ne.s32.totalorder %s31, %s34
      %p40 = scmp.eq.s32.totalorder %s21, 0
      %p41 = por %p39, %p40
      %p42 = scmp.ne.s32.totalorder %s31, %s34
      %p43 = scmp.eq.s32.totalorder %s26, 1
      %p44 = por %p42, %p43
      %p45 = scmp.ne.s32.totalorder %s34, %s35
      %p46 = scmp.eq.s32.totalorder %s26, 0
      %p47 = por %p45, %p46
      %p48 = scmp.ne.s32.totalorder %s34, %s35
      %p49 = scmp.eq.s32.totalorder %s27, 1
      %p50 = por %p48, %p49
      %p52 = scmp.ne.s32.totalorder %s35, %s51
      %p53 = scmp.eq.s32.totalorder %s27, 0
      %p54 = por %p52, %p53
      %s56 = sadd.s32 %s55, 1
      %p59 = scmp.eq.s32.totalorder %s21, 1
      %p60 = scmp.ne.s32.totalorder %s55, %s57
      %p61 = scmp.eq.s32.totalorder %s21, 0
      %p62 = por %p60, %p61
      %p63 = scmp.ne.s32.totalorder %s55, %s57
      %p64 = scmp.eq.s32.totalorder %s26, 1
      %p65 = por %p63, %p64
      %p66 = scmp.ne.s32.totalorder %s57, %s58
      %p67 = scmp.eq.s32.totalorder %s26, 0
      %p68 = por %p66, %p67
      %p69 = scmp.ne.s32.totalorder %s57, %s58
      %p70 = scmp.eq.s32.totalorder %s27, 1
      %p71 = por %p69, %p70
      %p73 = scmp.ne.s32.totalorder %s58, %s72
      %p74 = scmp.eq.s32.totalorder %s27, 0
      %p75 = por %p73, %p74
      %s77 = sadd.s32 %s76, 1
      %p80 = scmp.eq.s32.totalorder %s21, 1
      %p81 = scmp.ne.s32.totalorder %s76, %s78
      %p82 = scmp.eq.s32.totalorder %s21, 0
      %p83 = por %p81, %p82
      %p84 = scmp.ne.s32.totalorder %s76, %s78
      %p85 = scmp.eq.s32.totalorder %s26, 1
      %p86 = por %p84, %p85
      %p87 = scmp.ne.s32.totalorder %s78, %s79
      %p88 = scmp.eq.s32.totalorder %s26, 0
      %p89 = por %p87, %p88
      %p90 = scmp.ne.s32.totalorder %s78, %s79
      %p91 = scmp.eq.s32.totalorder %s27, 1
      %p92 = por %p90, %p91
      %p94 = scmp.ne.s32.totalorder %s79, %s93
      %p95 = scmp.eq.s32.totalorder %s27, 0
      %p96 = por %p94, %p95
      %s98 = sadd.s32 %s97, 1
      %p101 = scmp.eq.s32.totalorder %s21, 1
      %p102 = scmp.ne.s32.totalorder %s97, %s99
      %p103 = scmp.eq.s32.totalorder %s21, 0
      %p104 = por %p102, %p103
      %p105 = scmp.ne.s32.totalorder %s97, %s99
      %p106 = scmp.eq.s32.totalorder %s26, 1
      %p107 = por %p105, %p106
      %p108 = scmp.ne.s32.totalorder %s99, %s100
      %p109 = scmp.eq.s32.totalorder %s26, 0
      %p110 = por %p108, %p109
      %p111 = scmp.ne.s32.totalorder %s99, %s100
      %p112 = scmp.eq.s32.totalorder %s27, 1
      %p113 = por %p111, %p112
      %p115 = scmp.ne.s32.totalorder %s100, %s114
      %p116 = scmp.eq.s32.totalorder %s27, 0
      %p117 = por %p115, %p116
      %s119 = sadd.s32 %s118, 1
      %p122 = scmp.eq.s32.totalorder %s21, 1
      %p123 = scmp.ne.s32.totalorder %s118, %s120
      %p124 = scmp.eq.s32.totalorder %s21, 0
      %p125 = por %p123, %p124
      %p126 = scmp.ne.s32.totalorder %s118, %s120
      %p127 = scmp.eq.s32.totalorder %s26, 1
      %p128 = por %p126, %p127
      %p129 = scmp.ne.s32.totalorder %s120, %s121
      %p130 = scmp.eq.s32.totalorder %s26, 0
      %p131 = por %p129, %p130
      %p132 = scmp.ne.s32.totalorder %s120, %s121
      %p133 = scmp.eq.s32.totalorder %s27, 1
      %p134 = por %p132, %p133
      %p136 = scmp.ne.s32.totalorder %s121, %s135
      %p137 = scmp.eq.s32.totalorder %s27, 0
      %p138 = por %p136, %p137
      %s140 = sadd.s32 %s139, 1
      %p143 = scmp.eq.s32.totalorder %s21, 1
      %p144 = scmp.ne.s32.totalorder %s139, %s141
      %p145 = scmp.eq.s32.totalorder %s21, 0
      %p146 = por %p144, %p145
      %p147 = scmp.ne.s32.totalorder %s139, %s141
      %p148 = scmp.eq.s32.totalorder %s26, 1
      %p149 = por %p147, %p148
      %p150 = scmp.ne.s32.totalorder %s141, %s142
      %p151 = scmp.eq.s32.totalorder %s26, 0
      %p152 = por %p150, %p151
      %p153 = scmp.ne.s32.totalorder %s141, %s142
      %p154 = scmp.eq.s32.totalorder %s27, 1
      %p155 = por %p153, %p154
      %p157 = scmp.ne.s32.totalorder %s142, %s156
      %p158 = scmp.eq.s32.totalorder %s27, 0
      %p159 = por %p157, %p158
      %s161 = sadd.s32 %s160, 1
      %p164 = scmp.eq.s32.totalorder %s21, 1
      %p165 = scmp.ne.s32.totalorder %s160, %s162
      %p166 = scmp.eq.s32.totalorder %s21, 0
      %p167 = por %p165, %p166
      %p168 = scmp.ne.s32.totalorder %s160, %s162
      %p169 = scmp.eq.s32.totalorder %s26, 1
      %p170 = por %p168, %p169
      %p171 = scmp.ne.s32.totalorder %s162, %s163
      %p172 = scmp.eq.s32.totalorder %s26, 0
      %p173 = por %p171, %p172
      %p174 = scmp.ne.s32.totalorder %s162, %s163
      %p175 = scmp.eq.s32.totalorder %s27, 1
      %p176 = por %p174, %p175
      %p178 = scmp.ne.s32.totalorder %s163, %s177
      %p179 = scmp.eq.s32.totalorder %s27, 0
      %p180 = por %p178, %p179
      %s181 = ssub.s32 %s21, %s28
      %p182 = scmp.eq.s32.totalorder %s181, 0
      %s184 = sadd.s32 %s183, 1
      %s185 = scalar_select %p182, %s183, %s184
      %p188 = pneg %p182
      %p189 = scmp.eq.s32.totalorder %s21, 1
      %p190 = por %p188, %p189
      %p191 = scmp.ne.s32.totalorder %s183, %s186
      %p192 = scmp.eq.s32.totalorder %s21, 0
      %p193 = por %p191, %p192
      %p194 = scmp.ne.s32.totalorder %s183, %s186
      %p195 = scmp.eq.s32.totalorder %s26, 1
      %p196 = por %p194, %p195
      %p197 = scmp.ne.s32.totalorder %s186, %s187
      %p198 = scmp.eq.s32.totalorder %s26, 0
      %p199 = por %p197, %p198
      %p200 = scmp.ne.s32.totalorder %s186, %s187
      %p201 = scmp.eq.s32.totalorder %s27, 1
      %p202 = por %p200, %p201
      %p204 = scmp.ne.s32.totalorder %s187, %s203
      %p205 = scmp.eq.s32.totalorder %s27, 0
      %p206 = por %p204, %p205
      %p207 = scmp.le.s32.totalorder 1, %s21
      %p208 = scmp.lt.s32.totalorder %s21, 3
      %p209 = pnand %p207, %p208
      %p210 = pneg %p209
      // Predicated region
      $region9: #{tpu_custom_call.1} parent=5 // pred_check
        _
      $region10: #{tpu_custom_call.1} parent=5 // pred_check_branch
        %212 = sbr.rel (%p209) target = $region12
      $region11: #{tpu_custom_call.1} parent=5 // pred_region
        %s213 = ssub.s32 %s21, 1
        // Predicated region
        $region13: #{tpu_custom_call.1} parent=11 // pred_check
          %p214 = pneg %p68
        $region14: #{tpu_custom_call.1} parent=11 // pred_check_branch
          %216 = sbr.rel (%p214) target = $region16
        $region15: #{tpu_custom_call.1} parent=11 // pred_region
          _
        $region16: #{tpu_custom_call.1} parent=11 // pred_fallthru
          _
        // Predicated region
        $region17: #{tpu_custom_call.1} parent=11 // pred_check
          %p217 = pneg %p89
        $region18: #{tpu_custom_call.1} parent=11 // pred_check_branch
          %219 = sbr.rel (%p217) target = $region20
        $region19: #{tpu_custom_call.1} parent=11 // pred_region
          _
        $region20: #{tpu_custom_call.1} parent=11 // pred_fallthru
          _
        // Predicated region
        $region21: #{tpu_custom_call.1} parent=11 // pred_check
          %p220 = pneg %p110
        $region22: #{tpu_custom_call.1} parent=11 // pred_check_branch
          %222 = sbr.rel (%p220) target = $region24
        $region23: #{tpu_custom_call.1} parent=11 // pred_region
          _
        $region24: #{tpu_custom_call.1} parent=11 // pred_fallthru
          _
        // Predicated region
        $region25: #{tpu_custom_call.1} parent=11 // pred_check
          %p223 = pneg %p131
        $region26: #{tpu_custom_call.1} parent=11 // pred_check_branch
          %225 = sbr.rel (%p223) target = $region28
        $region27: #{tpu_custom_call.1} parent=11 // pred_region
          _
        $region28: #{tpu_custom_call.1} parent=11 // pred_fallthru
          _
        // Predicated region
        $region29: #{tpu_custom_call.1} parent=11 // pred_check
          %p226 = pneg %p152
        $region30: #{tpu_custom_call.1} parent=11 // pred_check_branch
          %228 = sbr.rel (%p226) target = $region32
        $region31: #{tpu_custom_call.1} parent=11 // pred_region
          _
        $region32: #{tpu_custom_call.1} parent=11 // pred_fallthru
          _
        // Predicated region
        $region33: #{tpu_custom_call.1} parent=11 // pred_check
          %p229 = pneg %p173
        $region34: #{tpu_custom_call.1} parent=11 // pred_check_branch
          %231 = sbr.rel (%p229) target = $region36
        $region35: #{tpu_custom_call.1} parent=11 // pred_region
          _
        $region36: #{tpu_custom_call.1} parent=11 // pred_fallthru
          _
      $region12: #{tpu_custom_call.1} parent=5 // pred_fallthru
        _
      %p232 = scmp.lt.s32.totalorder %s21, 2
      // Predicated region
      $region37: #{tpu_custom_call.1} parent=5 // pred_check
        %p233 = pneg %p232
      $region38: #{tpu_custom_call.1} parent=5 // pred_check_branch
        %235 = sbr.rel (%p233) target = $region40
      $region39: #{tpu_custom_call.1} parent=5 // pred_region
        // Predicated region
        $region41: #{tpu_custom_call.1} parent=39 // pred_check
          %p236 = pneg %p41
        $region42: #{tpu_custom_call.1} parent=39 // pred_check_branch
          %238 = sbr.rel (%p236) target = $region44
        $region43: #{tpu_custom_call.1} parent=39 // pred_region
          %s239 = sand.u32 %s31, 1
          %s240 = scalar_lea.sflag [#allocation4], %s239
          %s241 = sand.u32 %s31, 1
          %s242 = smul.addr %s241, 64
          %s243 = scalar_lea.vmem [#allocation3], %s242
          %s244 = smul.u32 4, %s21
          %s246 = ssub.s32 1024, 1024
          %247 = vsyncadd %s240, %s246
          %s248 = smul.addr %s244, 128
          %s249 = scalar_lea.hbm %s0, %s248
          %s250 = sshll.u32 %s243, 4
          %s251 = int_to_ptr.vmem [resolvable:$true] %s250
          %256 = dma.hbm_to_vmem [thread:$0]  %s249, 1024, %s251, %s240, 1024, 512, 32
        $region44: #{tpu_custom_call.1} parent=39 // pred_fallthru
          _
      $region40: #{tpu_custom_call.1} parent=5 // pred_fallthru
        _
      %p257 = scmp.le.s32.totalorder 1, %s21
      %p258 = scmp.lt.s32.totalorder %s21, 3
      %p259 = pnand %p257, %p258
      %p260 = pneg %p259
      // Predicated region
      $region45: #{tpu_custom_call.1} parent=5 // pred_check
        _
      $region46: #{tpu_custom_call.1} parent=5 // pred_check_branch
        %262 = sbr.rel (%p259) target = $region48
      $region47: #{tpu_custom_call.1} parent=5 // pred_region
        %s263 = ssub.s32 %s21, 1
        %s264 = sand.u32 %s34, 1
        %s265 = scalar_lea.sflag [#allocation4], %s264
        %s266 = sand.u32 %s34, 1
        %s267 = smul.addr %s266, 64
        %s268 = scalar_lea.vmem [#allocation3], %s267
        // Predicated region
        $region49: #{tpu_custom_call.1} parent=47 // pred_check
          %p269 = pneg %p47
        $region50: #{tpu_custom_call.1} parent=47 // pred_check_branch
          %271 = sbr.rel (%p269) target = $region52
        $region51: #{tpu_custom_call.1} parent=47 // pred_region
          %272 = dma.done %s265, 1024
        $region52: #{tpu_custom_call.1} parent=47 // pred_fallthru
          _
        %s273 = sand.u32 %s34, 1
        %s274 = scalar_lea.sflag [#allocation4], %s273
        %s275 = sand.u32 %s34, 1
        %s276 = smul.addr %s275, 64
        %s277 = scalar_lea.vmem [#allocation3], %s276
        %p278 = pneg %p47
        %p279 = pneg %p44
        %p280 = pneg %p68
        %p281 = pneg %p65
        %p282 = pneg %p89
        %p283 = pneg %p86
        %p284 = pneg %p110
        %p285 = pneg %p107
        %p286 = pneg %p131
        %p287 = pneg %p128
        %p288 = pneg %p152
        %p289 = pneg %p149
        %p290 = pneg %p173
        %p291 = pneg %p170
        %p292 = pneg %p199
        %p293 = pneg %p196
        %s294 = sand.u32 %s186, 1
        %s295 = scalar_lea.sflag [#allocation5], %s294
        %s296 = sand.u32 %s186, 1
        %s297 = smul.addr %s296, 4
        %s298 = scalar_lea.vmem [#allocation6], %s297
        %s299 = smul.u32 4, %s26
        %s300 = smul.u32 4, %s26
        %v301 = vld [vmem:[%s268] sm:$0xff]
        %v302 = vld [vmem:[%s268 + $0x8] sm:$0xff]
        %v303 = vld [vmem:[%s268 + $0x10] sm:$0xff]
        %v304 = vld [vmem:[%s268 + $0x18] sm:$0xff]
        %v305 = vld [vmem:[%s268 + $0x20] sm:$0xff]
        %v306 = vld [vmem:[%s268 + $0x28] sm:$0xff]
        %v307 = vld [vmem:[%s268 + $0x30] sm:$0xff]
        %v308 = vld [vmem:[%s268 + $0x38] sm:$0xff]
        %v309 = vld [vmem:[%s1] sm:$0xff]
        %v310 = vld [vmem:[%s1 + $0x8] sm:$0xff]
        %v311 = vld [vmem:[%s1 + $0x10] sm:$0xff]
        %v312 = vld [vmem:[%s1 + $0x18] sm:$0xff]
        %v313 = vld [vmem:[%s2] sm:$0xff]
        %v314 = vld [vmem:[%s2 + $0x8] sm:$0xff]
        %v315 = vld [vmem:[%s2 + $0x10] sm:$0xff]
        %v316 = vld [vmem:[%s2 + $0x18] sm:$0xff]
        %318 = vset.pattern.permute.xlu0 0
        %319 = vperm.xlu0 %318, %v313
        %v320 = vpop.permute.xlu0 %319
        %323 = vset.pattern.permute.xlu0 0
        %324 = vperm.xlu0 %323, %v314
        %v325 = vpop.permute.xlu0 %324
        %328 = vset.pattern.permute.xlu0 0
        %329 = vperm.xlu0 %328, %v315
        %v330 = vpop.permute.xlu0 %329
        %333 = vset.pattern.permute.xlu0 0
        %334 = vperm.xlu0 %333, %v316
        %v335 = vpop.permute.xlu0 %334
        %vm337 = vcmask 130048
        %v339 = vsel %vm337, %v309, 0
        %v342 = vsel %vm337, %v310, 0
        %v345 = vsel %vm337, %v311, 0
        %v348 = vsel %vm337, %v312, 0
        %350 = vmatprep.subr.mxu0 %v302
        %351 = vmatpush1.msra.mxu0 %v301
        %352 = vmatprep.subr.mxu0 %v306
        %353 = vmatpush1.msra.mxu0 %v305
        %354 = vmatprep.subr.mxu0 0.0
        %355 = vmatpush1.msra.mxu0 0.0
        %356 = vmatprep.subr.mxu0 0.0
        %357 = vmatpush1.msra.mxu0 0.0
        %358 = vmatprep.subr.mxu0 0.0
        %359 = vmatpush1.msra.mxu0 0.0
        %360 = vmatprep.subr.mxu0 0.0
        %361 = vmatpush1.msra.mxu0 0.0
        %362 = vmatprep.subr.mxu0 0.0
        %363 = vmatpush1.msra.mxu0 0.0
        %364 = vmatprep.subr.mxu0 0.0
        %365 = vmatpush1.msra.mxu0 0.0
        %366 = vmatprep.subr.mxu0 0.0
        %367 = vmatpush1.msra.mxu0 0.0
        %368 = vmatprep.subr.mxu0 0.0
        %369 = vmatpush1.msra.mxu0 0.0
        %370 = vmatprep.subr.mxu0 0.0
        %371 = vmatpush1.msra.mxu0 0.0
        %372 = vmatprep.subr.mxu0 0.0
        %373 = vmatpush1.msra.mxu0 0.0
        %374 = vmatprep.subr.mxu0 0.0
        %375 = vmatpush1.msra.mxu0 0.0
        %376 = vmatprep.subr.mxu0 0.0
        %377 = vmatpush1.msra.mxu0 0.0
        %378 = vmatprep.subr.mxu0 0.0
        %379 = vmatpush1.msra.mxu0 0.0
        %380 = vmatprep.subr.mxu0 0.0
        %381 = vmatpush1.msra.mxu0 0.0
        %382 = vmatprep.subr.mxu0 0.0
        %383 = vmatpush1.msra.mxu0 0.0
        %384 = vmatprep.subr.mxu0 0.0
        %385 = vmatpush1.msra.mxu0 0.0
        %386 = vmatprep.subr.mxu0 0.0
        %387 = vmatpush1.msra.mxu0 0.0
        %388 = vmatprep.subr.mxu0 0.0
        %389 = vmatpush1.msra.mxu0 0.0
        %390 = vmatprep.subr.mxu0 0.0
        %391 = vmatpush1.msra.mxu0 0.0
        %392 = vmatprep.subr.mxu0 0.0
        %393 = vmatpush1.msra.mxu0 0.0
        %394 = vmatprep.subr.mxu0 0.0
        %395 = vmatpush1.msra.mxu0 0.0
        %396 = vmatprep.subr.mxu0 0.0
        %397 = vmatpush1.msra.mxu0 0.0
        %398 = vmatprep.subr.mxu0 0.0
        %399 = vmatpush1.msra.mxu0 0.0
        %400 = vmatprep.subr.mxu0 0.0
        %401 = vmatpush1.msra.mxu0 0.0
        %402 = vmatprep.subr.mxu0 0.0
        %403 = vmatpush1.msra.mxu0 0.0
        %404 = vmatprep.subr.mxu0 0.0
        %405 = vmatpush1.msra.mxu0 0.0
        %406 = vmatprep.subr.mxu0 0.0
        %407 = vmatpush1.msra.mxu0 0.0
        %408 = vmatprep.subr.mxu0 0.0
        %409 = vmatpush1.msra.mxu0 0.0
        %410 = vmatprep.subr.mxu0 0.0
        %411 = vmatpush1.msra.mxu0 0.0
        %412 = vmatprep.subr.mxu0 0.0
        %413 = vmatpush1.msra.mxu0 0.0
        %414 = vmatprep.mubr.f32.mxu0 0.0
        %415 = vmatmul.mubr.f32.gmra.mrb[0].mxu0 %v339
        %v416 = vpop.f32.mrb[0].mxu0
        %v417 = vadd.f32 %v320, %v416
        %v418 = vpop.f32.mrb[0].mxu0
        %v419 = vadd.f32 %v320, %v418
        %420 = vmatprep.mubr.f32.mxu0 0.0
        %421 = vmatmul.mubr.f32.gmra.mrb[0].mxu0 %v342
        %v422 = vpop.f32.mrb[0].mxu0
        %v423 = vadd.f32 %v325, %v422
        %v424 = vpop.f32.mrb[0].mxu0
        %v425 = vadd.f32 %v325, %v424
        %426 = vmatprep.mubr.f32.mxu0 0.0
        %427 = vmatmul.mubr.f32.gmra.mrb[0].mxu0 %v345
        %v428 = vpop.f32.mrb[0].mxu0
        %v429 = vadd.f32 %v330, %v428
        %v430 = vpop.f32.mrb[0].mxu0
        %v431 = vadd.f32 %v330, %v430
        %432 = vmatprep.mubr.f32.mxu0 0.0
        %433 = vmatmul.mubr.f32.gmra.mrb[0].mxu0 %v348
        %v434 = vpop.f32.mrb[0].mxu0
        %v435 = vadd.f32 %v335, %v434
        %v436 = vpop.f32.mrb[0].mxu0
        %v437 = vadd.f32 %v335, %v436
        %438 = vdwg.mxu0
        %439 = vmatprep.subr.mxu0 %v304
        %440 = vmatpush1.msra.mxu0 %v303
        %441 = vmatprep.subr.mxu0 %v308
        %442 = vmatpush1.msra.mxu0 %v307
        %443 = vmatprep.subr.mxu0 0.0
        %444 = vmatpush1.msra.mxu0 0.0
        %445 = vmatprep.subr.mxu0 0.0
        %446 = vmatpush1.msra.mxu0 0.0
        %447 = vmatprep.subr.mxu0 0.0
        %448 = vmatpush1.msra.mxu0 0.0
        %449 = vmatprep.subr.mxu0 0.0
        %450 = vmatpush1.msra.mxu0 0.0
        %451 = vmatprep.subr.mxu0 0.0
        %452 = vmatpush1.msra.mxu0 0.0
        %453 = vmatprep.subr.mxu0 0.0
        %454 = vmatpush1.msra.mxu0 0.0
        %455 = vmatprep.subr.mxu0 0.0
        %456 = vmatpush1.msra.mxu0 0.0
        %457 = vmatprep.subr.mxu0 0.0
        %458 = vmatpush1.msra.mxu0 0.0
        %459 = vmatprep.subr.mxu0 0.0
        %460 = vmatpush1.msra.mxu0 0.0
        %461 = vmatprep.subr.mxu0 0.0
        %462 = vmatpush1.msra.mxu0 0.0
        %463 = vmatprep.subr.mxu0 0.0
        %464 = vmatpush1.msra.mxu0 0.0
        %465 = vmatprep.subr.mxu0 0.0
        %466 = vmatpush1.msra.mxu0 0.0
        %467 = vmatprep.subr.mxu0 0.0
        %468 = vmatpush1.msra.mxu0 0.0
        %469 = vmatprep.subr.mxu0 0.0
        %470 = vmatpush1.msra.mxu0 0.0
        %471 = vmatprep.subr.mxu0 0.0
        %472 = vmatpush1.msra.mxu0 0.0
        %473 = vmatprep.subr.mxu0 0.0
        %474 = vmatpush1.msra.mxu0 0.0
        %475 = vmatprep.subr.mxu0 0.0
        %476 = vmatpush1.msra.mxu0 0.0
        %477 = vmatprep.subr.mxu0 0.0
        %478 = vmatpush1.msra.mxu0 0.0
        %479 = vmatprep.subr.mxu0 0.0
        %480 = vmatpush1.msra.mxu0 0.0
        %481 = vmatprep.subr.mxu0 0.0
        %482 = vmatpush1.msra.mxu0 0.0
        %483 = vmatprep.subr.mxu0 0.0
        %484 = vmatpush1.msra.mxu0 0.0
        %485 = vmatprep.subr.mxu0 0.0
        %486 = vmatpush1.msra.mxu0 0.0
        %487 = vmatprep.subr.mxu0 0.0
        %488 = vmatpush1.msra.mxu0 0.0
        %489 = vmatprep.subr.mxu0 0.0
        %490 = vmatpush1.msra.mxu0 0.0
        %491 = vmatprep.subr.mxu0 0.0
        %492 = vmatpush1.msra.mxu0 0.0
        %493 = vmatprep.subr.mxu0 0.0
        %494 = vmatpush1.msra.mxu0 0.0
        %495 = vmatprep.subr.mxu0 0.0
        %496 = vmatpush1.msra.mxu0 0.0
        %497 = vmatprep.subr.mxu0 0.0
        %498 = vmatpush1.msra.mxu0 0.0
        %499 = vmatprep.subr.mxu0 0.0
        %500 = vmatpush1.msra.mxu0 0.0
        %501 = vmatprep.subr.mxu0 0.0
        %502 = vmatpush1.msra.mxu0 0.0
        %503 = vmatprep.mubr.f32.mxu0 0.0
        %504 = vmatmul.mubr.f32.gmra.mrb[0].mxu0 %v339
        %v505 = vpop.f32.mrb[0].mxu0
        %v506 = vadd.f32 %v320, %v505
        %v507 = vpop.f32.mrb[0].mxu0
        %v508 = vadd.f32 %v320, %v507
        %509 = vmatprep.mubr.f32.mxu0 0.0
        %510 = vmatmul.mubr.f32.gmra.mrb[0].mxu0 %v342
        %v511 = vpop.f32.mrb[0].mxu0
        %v512 = vadd.f32 %v325, %v511
        %v513 = vpop.f32.mrb[0].mxu0
        %v514 = vadd.f32 %v325, %v513
        %515 = vmatprep.mubr.f32.mxu0 0.0
        %516 = vmatmul.mubr.f32.gmra.mrb[0].mxu0 %v345
        %v517 = vpop.f32.mrb[0].mxu0
        %v518 = vadd.f32 %v330, %v517
        %v519 = vpop.f32.mrb[0].mxu0
        %v520 = vadd.f32 %v330, %v519
        %521 = vmatprep.mubr.f32.mxu0 0.0
        %522 = vmatmul.mubr.f32.gmra.mrb[0].mxu0 %v348
        %v523 = vpop.f32.mrb[0].mxu0
        %v524 = vadd.f32 %v335, %v523
        %v525 = vpop.f32.mrb[0].mxu0
        %v526 = vadd.f32 %v335, %v525
        %527 = vdwg.mxu0
        %vm528 = vcmp.gt.f32.partialorder %v417, 0.0
        %vm529 = vcmp.gt.f32.partialorder %v419, 0.0
        %vm530 = vcmp.gt.f32.partialorder %v506, 0.0
        %vm531 = vcmp.gt.f32.partialorder %v508, 0.0
        %vm532 = vcmp.gt.f32.partialorder %v423, 0.0
        %vm533 = vcmp.gt.f32.partialorder %v425, 0.0
        %vm534 = vcmp.gt.f32.partialorder %v512, 0.0
        %vm535 = vcmp.gt.f32.partialorder %v514, 0.0
        %vm536 = vcmp.gt.f32.partialorder %v429, 0.0
        %vm537 = vcmp.gt.f32.partialorder %v431, 0.0
        %vm538 = vcmp.gt.f32.partialorder %v518, 0.0
        %vm539 = vcmp.gt.f32.partialorder %v520, 0.0
        %vm540 = vcmp.gt.f32.partialorder %v435, 0.0
        %vm541 = vcmp.gt.f32.partialorder %v437, 0.0
        %vm542 = vcmp.gt.f32.partialorder %v524, 0.0
        %vm543 = vcmp.gt.f32.partialorder %v526, 0.0
        %v544 = vmul.f32 %v417, 0.01
        %v545 = vmul.f32 %v419, 0.01
        %v546 = vmul.f32 %v506, 0.01
        %v547 = vmul.f32 %v508, 0.01
        %v548 = vmul.f32 %v423, 0.01
        %v549 = vmul.f32 %v425, 0.01
        %v550 = vmul.f32 %v512, 0.01
        %v551 = vmul.f32 %v514, 0.01
        %v552 = vmul.f32 %v429, 0.01
        %v553 = vmul.f32 %v431, 0.01
        %v554 = vmul.f32 %v518, 0.01
        %v555 = vmul.f32 %v520, 0.01
        %v556 = vmul.f32 %v435, 0.01
        %v557 = vmul.f32 %v437, 0.01
        %v558 = vmul.f32 %v524, 0.01
        %v559 = vmul.f32 %v526, 0.01
        %v560 = vsel %vm528, %v417, %v544
        %v561 = vsel %vm529, %v419, %v545
        %v562 = vsel %vm530, %v506, %v546
        %v563 = vsel %vm531, %v508, %v547
        %v564 = vsel %vm532, %v423, %v548
        %v565 = vsel %vm533, %v425, %v549
        %v566 = vsel %vm534, %v512, %v550
        %v567 = vsel %vm535, %v514, %v551
        %v568 = vsel %vm536, %v429, %v552
        %v569 = vsel %vm537, %v431, %v553
        %v570 = vsel %vm538, %v518, %v554
        %v571 = vsel %vm539, %v520, %v555
        %v572 = vsel %vm540, %v435, %v556
        %v573 = vsel %vm541, %v437, %v557
        %v574 = vsel %vm542, %v524, %v558
        %v575 = vsel %vm543, %v526, %v559
        %v576 = vld [vmem:[%s3] sm:$0xff]
        %v577 = vld [vmem:[%s3 + $0x8] sm:$0xff]
        %v578 = vld [vmem:[%s3 + $0x10] sm:$0xff]
        %v579 = vld [vmem:[%s3 + $0x18] sm:$0xff]
        %v580 = vld [vmem:[%s4] sm:$0xff]
        %v581 = vld [vmem:[%s4 + $0x8] sm:$0xff]
        %v582 = vld [vmem:[%s4 + $0x10] sm:$0xff]
        %v583 = vld [vmem:[%s4 + $0x18] sm:$0xff]
        %585 = vset.pattern.permute.xlu0 0
        %586 = vperm.xlu0 %585, %v580
        %v587 = vpop.permute.xlu0 %586
        %590 = vset.pattern.permute.xlu0 0
        %591 = vperm.xlu0 %590, %v581
        %v592 = vpop.permute.xlu0 %591
        %595 = vset.pattern.permute.xlu0 0
        %596 = vperm.xlu0 %595, %v582
        %v597 = vpop.permute.xlu0 %596
        %600 = vset.pattern.permute.xlu0 0
        %601 = vperm.xlu0 %600, %v583
        %v602 = vpop.permute.xlu0 %601
        %vm604 = vcmask 261120
        %v606 = vsel %vm604, %v576, 0
        %v609 = vsel %vm604, %v577, 0
        %v612 = vsel %vm604, %v578, 0
        %v615 = vsel %vm604, %v579, 0
        %617 = vmatprep.subr.mxu0 %v561
        %618 = vmatpush1.msra.mxu0 %v560
        %619 = vmatprep.subr.mxu0 %v565
        %620 = vmatpush1.msra.mxu0 %v564
        %621 = vmatprep.subr.mxu0 %v569
        %622 = vmatpush1.msra.mxu0 %v568
        %623 = vmatprep.subr.mxu0 %v573
        %624 = vmatpush1.msra.mxu0 %v572
        %625 = vmatprep.subr.mxu0 0.0
        %626 = vmatpush1.msra.mxu0 0.0
        %627 = vmatprep.subr.mxu0 0.0
        %628 = vmatpush1.msra.mxu0 0.0
        %629 = vmatprep.subr.mxu0 0.0
        %630 = vmatpush1.msra.mxu0 0.0
        %631 = vmatprep.subr.mxu0 0.0
        %632 = vmatpush1.msra.mxu0 0.0
        %633 = vmatprep.subr.mxu0 0.0
        %634 = vmatpush1.msra.mxu0 0.0
        %635 = vmatprep.subr.mxu0 0.0
        %636 = vmatpush1.msra.mxu0 0.0
        %637 = vmatprep.subr.mxu0 0.0
        %638 = vmatpush1.msra.mxu0 0.0
        %639 = vmatprep.subr.mxu0 0.0
        %640 = vmatpush1.msra.mxu0 0.0
        %641 = vmatprep.subr.mxu0 0.0
        %642 = vmatpush1.msra.mxu0 0.0
        %643 = vmatprep.subr.mxu0 0.0
        %644 = vmatpush1.msra.mxu0 0.0
        %645 = vmatprep.subr.mxu0 0.0
        %646 = vmatpush1.msra.mxu0 0.0
        %647 = vmatprep.subr.mxu0 0.0
        %648 = vmatpush1.msra.mxu0 0.0
        %649 = vmatprep.subr.mxu0 0.0
        %650 = vmatpush1.msra.mxu0 0.0
        %651 = vmatprep.subr.mxu0 0.0
        %652 = vmatpush1.msra.mxu0 0.0
        %653 = vmatprep.subr.mxu0 0.0
        %654 = vmatpush1.msra.mxu0 0.0
        %655 = vmatprep.subr.mxu0 0.0
        %656 = vmatpush1.msra.mxu0 0.0
        %657 = vmatprep.subr.mxu0 0.0
        %658 = vmatpush1.msra.mxu0 0.0
        %659 = vmatprep.subr.mxu0 0.0
        %660 = vmatpush1.msra.mxu0 0.0
        %661 = vmatprep.subr.mxu0 0.0
        %662 = vmatpush1.msra.mxu0 0.0
        %663 = vmatprep.subr.mxu0 0.0
        %664 = vmatpush1.msra.mxu0 0.0
        %665 = vmatprep.subr.mxu0 0.0
        %666 = vmatpush1.msra.mxu0 0.0
        %667 = vmatprep.subr.mxu0 0.0
        %668 = vmatpush1.msra.mxu0 0.0
        %669 = vmatprep.subr.mxu0 0.0
        %670 = vmatpush1.msra.mxu0 0.0
        %671 = vmatprep.subr.mxu0 0.0
        %672 = vmatpush1.msra.mxu0 0.0
        %673 = vmatprep.subr.mxu0 0.0
        %674 = vmatpush1.msra.mxu0 0.0
        %675 = vmatprep.subr.mxu0 0.0
        %676 = vmatpush1.msra.mxu0 0.0
        %677 = vmatprep.subr.mxu0 0.0
        %678 = vmatpush1.msra.mxu0 0.0
        %679 = vmatprep.subr.mxu0 0.0
        %680 = vmatpush1.msra.mxu0 0.0
        %681 = vmatprep.mubr.f32.mxu0 0.0
        %682 = vmatmul.mubr.f32.gmra.mrb[0].mxu0 %v606
        %v683 = vpop.f32.mrb[0].mxu0
        %v684 = vadd.f32 %v587, %v683
        %v685 = vpop.f32.mrb[0].mxu0
        %v686 = vadd.f32 %v587, %v685
        %687 = vmatprep.mubr.f32.mxu0 0.0
        %688 = vmatmul.mubr.f32.gmra.mrb[0].mxu0 %v609
        %v689 = vpop.f32.mrb[0].mxu0
        %v690 = vadd.f32 %v592, %v689
        %v691 = vpop.f32.mrb[0].mxu0
        %v692 = vadd.f32 %v592, %v691
        %693 = vmatprep.mubr.f32.mxu0 0.0
        %694 = vmatmul.mubr.f32.gmra.mrb[0].mxu0 %v612
        %v695 = vpop.f32.mrb[0].mxu0
        %v696 = vadd.f32 %v597, %v695
        %v697 = vpop.f32.mrb[0].mxu0
        %v698 = vadd.f32 %v597, %v697
        %699 = vmatprep.mubr.f32.mxu0 0.0
        %700 = vmatmul.mubr.f32.gmra.mrb[0].mxu0 %v615
        %v701 = vpop.f32.mrb[0].mxu0
        %v702 = vadd.f32 %v602, %v701
        %v703 = vpop.f32.mrb[0].mxu0
        %v704 = vadd.f32 %v602, %v703
        %705 = vdwg.mxu0
        %706 = vmatprep.subr.mxu0 %v563
        %707 = vmatpush1.msra.mxu0 %v562
        %708 = vmatprep.subr.mxu0 %v567
        %709 = vmatpush1.msra.mxu0 %v566
        %710 = vmatprep.subr.mxu0 %v571
        %711 = vmatpush1.msra.mxu0 %v570
        %712 = vmatprep.subr.mxu0 %v575
        %713 = vmatpush1.msra.mxu0 %v574
        %714 = vmatprep.subr.mxu0 0.0
        %715 = vmatpush1.msra.mxu0 0.0
        %716 = vmatprep.subr.mxu0 0.0
        %717 = vmatpush1.msra.mxu0 0.0
        %718 = vmatprep.subr.mxu0 0.0
        %719 = vmatpush1.msra.mxu0 0.0
        %720 = vmatprep.subr.mxu0 0.0
        %721 = vmatpush1.msra.mxu0 0.0
        %722 = vmatprep.subr.mxu0 0.0
        %723 = vmatpush1.msra.mxu0 0.0
        %724 = vmatprep.subr.mxu0 0.0
        %725 = vmatpush1.msra.mxu0 0.0
        %726 = vmatprep.subr.mxu0 0.0
        %727 = vmatpush1.msra.mxu0 0.0
        %728 = vmatprep.subr.mxu0 0.0
        %729 = vmatpush1.msra.mxu0 0.0
        %730 = vmatprep.subr.mxu0 0.0
        %731 = vmatpush1.msra.mxu0 0.0
        %732 = vmatprep.subr.mxu0 0.0
        %733 = vmatpush1.msra.mxu0 0.0
        %734 = vmatprep.subr.mxu0 0.0
        %735 = vmatpush1.msra.mxu0 0.0
        %736 = vmatprep.subr.mxu0 0.0
        %737 = vmatpush1.msra.mxu0 0.0
        %738 = vmatprep.subr.mxu0 0.0
        %739 = vmatpush1.msra.mxu0 0.0
        %740 = vmatprep.subr.mxu0 0.0
        %741 = vmatpush1.msra.mxu0 0.0
        %742 = vmatprep.subr.mxu0 0.0
        %743 = vmatpush1.msra.mxu0 0.0
        %744 = vmatprep.subr.mxu0 0.0
        %745 = vmatpush1.msra.mxu0 0.0
        %746 = vmatprep.subr.mxu0 0.0
        %747 = vmatpush1.msra.mxu0 0.0
        %748 = vmatprep.subr.mxu0 0.0
        %749 = vmatpush1.msra.mxu0 0.0
        %750 = vmatprep.subr.mxu0 0.0
        %751 = vmatpush1.msra.mxu0 0.0
        %752 = vmatprep.subr.mxu0 0.0
        %753 = vmatpush1.msra.mxu0 0.0
        %754 = vmatprep.subr.mxu0 0.0
        %755 = vmatpush1.msra.mxu0 0.0
        %756 = vmatprep.subr.mxu0 0.0
        %757 = vmatpush1.msra.mxu0 0.0
        %758 = vmatprep.subr.mxu0 0.0
        %759 = vmatpush1.msra.mxu0 0.0
        %760 = vmatprep.subr.mxu0 0.0
        %761 = vmatpush1.msra.mxu0 0.0
        %762 = vmatprep.subr.mxu0 0.0
        %763 = vmatpush1.msra.mxu0 0.0
        %764 = vmatprep.subr.mxu0 0.0
        %765 = vmatpush1.msra.mxu0 0.0
        %766 = vmatprep.subr.mxu0 0.0
        %767 = vmatpush1.msra.mxu0 0.0
        %768 = vmatprep.subr.mxu0 0.0
        %769 = vmatpush1.msra.mxu0 0.0
        %770 = vmatprep.mubr.f32.mxu0 0.0
        %771 = vmatmul.mubr.f32.gmra.mrb[0].mxu0 %v606
        %v772 = vpop.f32.mrb[0].mxu0
        %v773 = vadd.f32 %v587, %v772
        %v774 = vpop.f32.mrb[0].mxu0
        %v775 = vadd.f32 %v587, %v774
        %776 = vmatprep.mubr.f32.mxu0 0.0
        %777 = vmatmul.mubr.f32.gmra.mrb[0].mxu0 %v609
        %v778 = vpop.f32.mrb[0].mxu0
        %v779 = vadd.f32 %v592, %v778
        %v780 = vpop.f32.mrb[0].mxu0
        %v781 = vadd.f32 %v592, %v780
        %782 = vmatprep.mubr.f32.mxu0 0.0
        %783 = vmatmul.mubr.f32.gmra.mrb[0].mxu0 %v612
        %v784 = vpop.f32.mrb[0].mxu0
        %v785 = vadd.f32 %v597, %v784
        %v786 = vpop.f32.mrb[0].mxu0
        %v787 = vadd.f32 %v597, %v786
        %788 = vmatprep.mubr.f32.mxu0 0.0
        %789 = vmatmul.mubr.f32.gmra.mrb[0].mxu0 %v615
        %v790 = vpop.f32.mrb[0].mxu0
        %v791 = vadd.f32 %v602, %v790
        %v792 = vpop.f32.mrb[0].mxu0
        %v793 = vadd.f32 %v602, %v792
        %794 = vdwg.mxu0
        %vm795 = vcmp.gt.f32.partialorder %v684, 0.0
        %vm796 = vcmp.gt.f32.partialorder %v686, 0.0
        %vm797 = vcmp.gt.f32.partialorder %v773, 0.0
        %vm798 = vcmp.gt.f32.partialorder %v775, 0.0
        %vm799 = vcmp.gt.f32.partialorder %v690, 0.0
        %vm800 = vcmp.gt.f32.partialorder %v692, 0.0
        %vm801 = vcmp.gt.f32.partialorder %v779, 0.0
        %vm802 = vcmp.gt.f32.partialorder %v781, 0.0
        %vm803 = vcmp.gt.f32.partialorder %v696, 0.0
        %vm804 = vcmp.gt.f32.partialorder %v698, 0.0
        %vm805 = vcmp.gt.f32.partialorder %v785, 0.0
        %vm806 = vcmp.gt.f32.partialorder %v787, 0.0
        %vm807 = vcmp.gt.f32.partialorder %v702, 0.0
        %vm808 = vcmp.gt.f32.partialorder %v704, 0.0
        %vm809 = vcmp.gt.f32.partialorder %v791, 0.0
        %vm810 = vcmp.gt.f32.partialorder %v793, 0.0
        %v811 = vmul.f32 %v684, 0.01
        %v812 = vmul.f32 %v686, 0.01
        %v813 = vmul.f32 %v773, 0.01
        %v814 = vmul.f32 %v775, 0.01
        %v815 = vmul.f32 %v690, 0.01
        %v816 = vmul.f32 %v692, 0.01
        %v817 = vmul.f32 %v779, 0.01
        %v818 = vmul.f32 %v781, 0.01
        %v819 = vmul.f32 %v696, 0.01
        %v820 = vmul.f32 %v698, 0.01
        %v821 = vmul.f32 %v785, 0.01
        %v822 = vmul.f32 %v787, 0.01
        %v823 = vmul.f32 %v702, 0.01
        %v824 = vmul.f32 %v704, 0.01
        %v825 = vmul.f32 %v791, 0.01
        %v826 = vmul.f32 %v793, 0.01
        %v827 = vsel %vm795, %v684, %v811
        %v828 = vsel %vm796, %v686, %v812
        %v829 = vsel %vm797, %v773, %v813
        %v830 = vsel %vm798, %v775, %v814
        %v831 = vsel %vm799, %v690, %v815
        %v832 = vsel %vm800, %v692, %v816
        %v833 = vsel %vm801, %v779, %v817
        %v834 = vsel %vm802, %v781, %v818
        %v835 = vsel %vm803, %v696, %v819
        %v836 = vsel %vm804, %v698, %v820
        %v837 = vsel %vm805, %v785, %v821
        %v838 = vsel %vm806, %v787, %v822
        %v839 = vsel %vm807, %v702, %v823
        %v840 = vsel %vm808, %v704, %v824
        %v841 = vsel %vm809, %v791, %v825
        %v842 = vsel %vm810, %v793, %v826
        %v843 = vld [vmem:[%s5] sm:$0x1]
        %v844 = vld [vmem:[#allocation2] sm:$0x1]
        %846 = vset.pattern.permute.xlu0 0
        %847 = vperm.xlu0 %846, %v844
        %v848 = vpop.permute.xlu0 %847
        %v850 = vlaneseq
        %v851 = vshrl.u32 %v850, 7
        %v852 = vsub.s32 0, %v851
        %v853 = vrot.slane %v848, %v852
        %v855 = vsel %vm604, %v843, 0
        %857 = vmatprep.subr.mxu0 %v828
        %858 = vmatpush1.msra.mxu0 %v827
        %859 = vmatprep.subr.mxu0 %v832
        %860 = vmatpush1.msra.mxu0 %v831
        %861 = vmatprep.subr.mxu0 %v836
        %862 = vmatpush1.msra.mxu0 %v835
        %863 = vmatprep.subr.mxu0 %v840
        %864 = vmatpush1.msra.mxu0 %v839
        %865 = vmatprep.subr.mxu0 0.0
        %866 = vmatpush1.msra.mxu0 0.0
        %867 = vmatprep.subr.mxu0 0.0
        %868 = vmatpush1.msra.mxu0 0.0
        %869 = vmatprep.subr.mxu0 0.0
        %870 = vmatpush1.msra.mxu0 0.0
        %871 = vmatprep.subr.mxu0 0.0
        %872 = vmatpush1.msra.mxu0 0.0
        %873 = vmatprep.subr.mxu0 0.0
        %874 = vmatpush1.msra.mxu0 0.0
        %875 = vmatprep.subr.mxu0 0.0
        %876 = vmatpush1.msra.mxu0 0.0
        %877 = vmatprep.subr.mxu0 0.0
        %878 = vmatpush1.msra.mxu0 0.0
        %879 = vmatprep.subr.mxu0 0.0
        %880 = vmatpush1.msra.mxu0 0.0
        %881 = vmatprep.subr.mxu0 0.0
        %882 = vmatpush1.msra.mxu0 0.0
        %883 = vmatprep.subr.mxu0 0.0
        %884 = vmatpush1.msra.mxu0 0.0
        %885 = vmatprep.subr.mxu0 0.0
        %886 = vmatpush1.msra.mxu0 0.0
        %887 = vmatprep.subr.mxu0 0.0
        %888 = vmatpush1.msra.mxu0 0.0
        %889 = vmatprep.subr.mxu0 0.0
        %890 = vmatpush1.msra.mxu0 0.0
        %891 = vmatprep.subr.mxu0 0.0
        %892 = vmatpush1.msra.mxu0 0.0
        %893 = vmatprep.subr.mxu0 0.0
        %894 = vmatpush1.msra.mxu0 0.0
        %895 = vmatprep.subr.mxu0 0.0
        %896 = vmatpush1.msra.mxu0 0.0
        %897 = vmatprep.subr.mxu0 0.0
        %898 = vmatpush1.msra.mxu0 0.0
        %899 = vmatprep.subr.mxu0 0.0
        %900 = vmatpush1.msra.mxu0 0.0
        %901 = vmatprep.subr.mxu0 0.0
        %902 = vmatpush1.msra.mxu0 0.0
        %903 = vmatprep.subr.mxu0 0.0
        %904 = vmatpush1.msra.mxu0 0.0
        %905 = vmatprep.subr.mxu0 0.0
        %906 = vmatpush1.msra.mxu0 0.0
        %907 = vmatprep.subr.mxu0 0.0
        %908 = vmatpush1.msra.mxu0 0.0
        %909 = vmatprep.subr.mxu0 0.0
        %910 = vmatpush1.msra.mxu0 0.0
        %911 = vmatprep.subr.mxu0 0.0
        %912 = vmatpush1.msra.mxu0 0.0
        %913 = vmatprep.subr.mxu0 0.0
        %914 = vmatpush1.msra.mxu0 0.0
        %915 = vmatprep.subr.mxu0 0.0
        %916 = vmatpush1.msra.mxu0 0.0
        %917 = vmatprep.subr.mxu0 0.0
        %918 = vmatpush1.msra.mxu0 0.0
        %919 = vmatprep.subr.mxu0 0.0
        %920 = vmatpush1.msra.mxu0 0.0
        %921 = vmatprep.mubr.f32.mxu0 0.0
        %922 = vmatmul.mubr.f32.gmra.mrb[0].mxu0 %v855
        %v923 = vpop.f32.mrb[0].mxu0
        %v924 = vadd.f32 %v853, %v923
        %v925 = vpop.f32.mrb[0].mxu0
        %v926 = vadd.f32 %v853, %v925
        %927 = vdwg.mxu0
        %928 = vmatprep.subr.mxu0 %v830
        %929 = vmatpush1.msra.mxu0 %v829
        %930 = vmatprep.subr.mxu0 %v834
        %931 = vmatpush1.msra.mxu0 %v833
        %932 = vmatprep.subr.mxu0 %v838
        %933 = vmatpush1.msra.mxu0 %v837
        %934 = vmatprep.subr.mxu0 %v842
        %935 = vmatpush1.msra.mxu0 %v841
        %936 = vmatprep.subr.mxu0 0.0
        %937 = vmatpush1.msra.mxu0 0.0
        %938 = vmatprep.subr.mxu0 0.0
        %939 = vmatpush1.msra.mxu0 0.0
        %940 = vmatprep.subr.mxu0 0.0
        %941 = vmatpush1.msra.mxu0 0.0
        %942 = vmatprep.subr.mxu0 0.0
        %943 = vmatpush1.msra.mxu0 0.0
        %944 = vmatprep.subr.mxu0 0.0
        %945 = vmatpush1.msra.mxu0 0.0
        %946 = vmatprep.subr.mxu0 0.0
        %947 = vmatpush1.msra.mxu0 0.0
        %948 = vmatprep.subr.mxu0 0.0
        %949 = vmatpush1.msra.mxu0 0.0
        %950 = vmatprep.subr.mxu0 0.0
        %951 = vmatpush1.msra.mxu0 0.0
        %952 = vmatprep.subr.mxu0 0.0
        %953 = vmatpush1.msra.mxu0 0.0
        %954 = vmatprep.subr.mxu0 0.0
        %955 = vmatpush1.msra.mxu0 0.0
        %956 = vmatprep.subr.mxu0 0.0
        %957 = vmatpush1.msra.mxu0 0.0
        %958 = vmatprep.subr.mxu0 0.0
        %959 = vmatpush1.msra.mxu0 0.0
        %960 = vmatprep.subr.mxu0 0.0
        %961 = vmatpush1.msra.mxu0 0.0
        %962 = vmatprep.subr.mxu0 0.0
        %963 = vmatpush1.msra.mxu0 0.0
        %964 = vmatprep.subr.mxu0 0.0
        %965 = vmatpush1.msra.mxu0 0.0
        %966 = vmatprep.subr.mxu0 0.0
        %967 = vmatpush1.msra.mxu0 0.0
        %968 = vmatprep.subr.mxu0 0.0
        %969 = vmatpush1.msra.mxu0 0.0
        %970 = vmatprep.subr.mxu0 0.0
        %971 = vmatpush1.msra.mxu0 0.0
        %972 = vmatprep.subr.mxu0 0.0
        %973 = vmatpush1.msra.mxu0 0.0
        %974 = vmatprep.subr.mxu0 0.0
        %975 = vmatpush1.msra.mxu0 0.0
        %976 = vmatprep.subr.mxu0 0.0
        %977 = vmatpush1.msra.mxu0 0.0
        %978 = vmatprep.subr.mxu0 0.0
        %979 = vmatpush1.msra.mxu0 0.0
        %980 = vmatprep.subr.mxu0 0.0
        %981 = vmatpush1.msra.mxu0 0.0
        %982 = vmatprep.subr.mxu0 0.0
        %983 = vmatpush1.msra.mxu0 0.0
        %984 = vmatprep.subr.mxu0 0.0
        %985 = vmatpush1.msra.mxu0 0.0
        %986 = vmatprep.subr.mxu0 0.0
        %987 = vmatpush1.msra.mxu0 0.0
        %988 = vmatprep.subr.mxu0 0.0
        %989 = vmatpush1.msra.mxu0 0.0
        %990 = vmatprep.subr.mxu0 0.0
        %991 = vmatpush1.msra.mxu0 0.0
        %992 = vmatprep.mubr.f32.mxu0 0.0
        %993 = vmatmul.mubr.f32.gmra.mrb[0].mxu0 %v855
        %v994 = vpop.f32.mrb[0].mxu0
        %v995 = vadd.f32 %v853, %v994
        %v996 = vpop.f32.mrb[0].mxu0
        %v997 = vadd.f32 %v853, %v996
        %998 = vdwg.mxu0
        %v999 = vtanh.pop %v924
        %v1000 = vtanh.pop %v926
        %v1001 = vtanh.pop %v995
        %v1002 = vtanh.pop %v997
        %v1003 = vmul.f32 %v999, -1.0
        %v1004 = vmul.f32 %v1000, -1.0
        %v1005 = vmul.f32 %v1001, -1.0
        %v1006 = vmul.f32 %v1002, -1.0
        %v1011 = vcombine.low %v1003, %v1004
        %v1012 = vcombine.low %v1005, %v1006
        %v1014 = vunpack.c.l.s4 1966171168
        %v1015 = vunpack.c.0.s8 %v1014
        %v1016 = vlaneseq
        %v1017 = vshrl.u32 %v1016, 7
        %v1018 = vsub.s32 %v1015, %v1017
        %v1019 = vrot.slane %v1011, %v1018
        %v1021 = vunpack.c.l.s4 1966171168
        %v1022 = vunpack.c.0.s8 %v1021
        %v1023 = vlaneseq
        %v1024 = vshrl.u32 %v1023, 7
        %v1025 = vsub.s32 %v1022, %v1024
        %v1026 = vrot.slane %v1012, %v1025
        %v1027 = vcombine.low %v1019, %v1026
        %v1029 = vunpack.c.l.s4 1966171168
        %v1030 = vunpack.c.0.s8 %v1029
        %v1031 = vlaneseq
        %v1032 = vshrl.u32 %v1031, 7
        %v1033 = vsub.s32 %v1030, %v1032
        %v1034 = vrot.slane %v1027, %v1033
        %v1036 = vlaneseq
        %vm1037 = vcmp.ge.s32.totalorder %v1036, 0
        %vm1038 = vcmp.lt.s32.totalorder %v1036, 512
        %vm1039 = vmand %vm1037, %vm1038
        %1040 = vst.msk [vmem:[%s298] sm:$0xf] %vm1039, %v1034
        %s1041 = sand.u32 %s186, 1
        %s1042 = scalar_lea.sflag [#allocation5], %s1041
        %s1043 = sand.u32 %s186, 1
        %s1044 = smul.addr %s1043, 4
        %s1045 = scalar_lea.vmem [#allocation6], %s1044
        // Predicated region
        $region53: #{tpu_custom_call.1} parent=47 // pred_check
          %p1046 = pneg %p196
        $region54: #{tpu_custom_call.1} parent=47 // pred_check_branch
          %1048 = sbr.rel (%p1046) target = $region56
        $region55: #{tpu_custom_call.1} parent=47 // pred_region
          %s1049 = smul.u32 4, %s26
          %s1051 = ssub.s32 64, 64
          %1052 = vsyncadd %s1042, %s1051
          %s1053 = smul.addr %s1049, 16
          %s1054 = scalar_lea.hbm %s7, %s1053
          %s1056 = sshll.u32 %s1045, 4
          %s1057 = int_to_ptr.vmem [resolvable:$true] %s1056
          %1059 = dma.vmem_to_hbm [thread:$0]  %s1057, 64, %s1054, %s1042
        $region56: #{tpu_custom_call.1} parent=47 // pred_fallthru
          _
      $region48: #{tpu_custom_call.1} parent=5 // pred_fallthru
        _
      %p1060 = scmp.le.s32.totalorder 2, %s21
      // Predicated region
      $region57: #{tpu_custom_call.1} parent=5 // pred_check
        %p1061 = pneg %p1060
      $region58: #{tpu_custom_call.1} parent=5 // pred_check_branch
        %1063 = sbr.rel (%p1061) target = $region60
      $region59: #{tpu_custom_call.1} parent=5 // pred_region
        %s1064 = ssub.s32 %s21, 2
        // Predicated region
        $region61: #{tpu_custom_call.1} parent=59 // pred_check
          %p1065 = pneg %p202
        $region62: #{tpu_custom_call.1} parent=59 // pred_check_branch
          %1067 = sbr.rel (%p1065) target = $region64
        $region63: #{tpu_custom_call.1} parent=59 // pred_region
          %s1068 = sand.u32 %s187, 1
          %s1069 = scalar_lea.sflag [#allocation5], %s1068
          %s1070 = sand.u32 %s187, 1
          %s1071 = smul.addr %s1070, 4
          %s1072 = scalar_lea.vmem [#allocation6], %s1071
          %1073 = dma.done %s1069, 64
        $region64: #{tpu_custom_call.1} parent=59 // pred_fallthru
          _
      $region60: #{tpu_custom_call.1} parent=5 // pred_fallthru
        _
    $region6: #{tpu_custom_call.1} parent=1 // loop_footer
      %s25 = sadd.s32 1, %s21
    $region7: #{tpu_custom_call.1} parent=1 // loop_footer_branch
      %20 = sbr.rel target = $region3
    $region8: #{tpu_custom_call.1} parent=1 // loop_exit
      _
    %1074 = vsyncpa [#allocation4], 1
    %s1075 = scalar_lea.sflag [#allocation4], 1
    %1076 = vsyncpa %s1075, 1
    %1077 = vsyncpa [#allocation5], 1
    %s1078 = scalar_lea.sflag [#allocation5], 1
    %1079 = vsyncpa %s1078, 1

</llo_original>
